<compile_context>
chip_gen: v6e
topology: v6e:2x2x1
jax: 0.10.0
libtpu: 0.0.40
codegen_flags: <defaults>
</compile_context>

<pallas_src>
import math

import jax
import jax.numpy as jnp
from jax.experimental import pallas as pl
from jax.experimental.pallas import tpu as pltpu

# Small shapes implied by the module config (cfg.num_features, cfg.hidden,
# cfg.label_num). One-hot token features over a masked sequence.
B, S = 2, 8
NUM_FEATURES = 256
HIDDEN = 32
HALF = HIDDEN // 2
LABELS = 4

PACK_ROWS = 8 + HIDDEN + 8      # 48: b_hidden @ row 0, w_tail @ rows 8..40, b_tail @ row 40
PACK_LANES = 128                # lane-dense parameter / output width
OUT_LANES = 128


def onehot_mlp_kernel(x_ref, sel_ref, w_hidden_ref, pack_ref, out_ref):
    """Single program over the whole flattened batch.

    x_ref:        (B*S, F)        bf16
    sel_ref:      (B, B*S)        f32   block-diagonal mask/len selector
    w_hidden_ref: (F, H)          bf16
    pack_ref:     (48, 128)       f32   [b_hidden | w_tail(padded) | b_tail(padded)]
    out_ref:      (B, 128)        f32   labels in lanes 0..LABELS-1
    """
    f32 = jnp.float32

    # 8-row / lane-aligned static slices of the packed-parameter buffer
    # (zero-cost ref views).
    b_hidden = pack_ref[0:1, 0:HIDDEN]              # (1, H)
    w_tail = pack_ref[8:8 + HIDDEN, :]              # (H, 128), cols >= LABELS are zero
    b_tail = pack_ref[8 + HIDDEN:8 + HIDDEN + 1, :]  # (1, 128), cols >= LABELS are zero

    # hidden: Linear(F -> H) -- bf16 operands, f32 accumulation on the MXU.
    h = jnp.dot(x_ref[...], w_hidden_ref[...], preferred_element_type=f32) + b_hidden
    # predict: Dropout (identity in eval) -> ReLU.
    h = jnp.maximum(h, 0.0)                          # (B*S, H)

    # Masked mean pulled in front of the (linear) fused tail:
    # pooled[b] = sum_s mask[b,s]/len[b] * relu(h)[b,s]
    pooled = jnp.dot(sel_ref[...], h, preferred_element_type=f32)    # (B, H)

    # predict-Linear(H -> H/2) and cls(H/2 -> L) pre-fused into w_tail/b_tail,
    # zero-padded to 128 lanes so the store below is lane-dense.
    out_ref[...] = jnp.dot(pooled, w_tail, preferred_element_type=f32) + b_tail


def onehot_mlp_pallas(x, mask, params):
    """x: (B, S, F) f32 ; mask: (B, S) f32 ; params: f32 dict. -> (B, LABELS) f32."""
    # --- layout plumbing in the wrapper (free) ---
    x_flat = x.reshape(B * S, NUM_FEATURES).astype(jnp.bfloat16)
    w_hidden_bf16 = params['w_hidden'].astype(jnp.bfloat16)

    # Fuse predict-Linear and cls-Linear (no nonlinearity between them).
    w_tail = params['w_pred'] @ params['w_cls']                      # (H, L)
    b_tail = params['b_pred'] @ params['w_cls'] + params['b_cls']    # (1, L)

    # Pack every small parameter into one 8-row-aligned, 128-lane f32 buffer.
    pack = jnp.zeros((PACK_ROWS, PACK_LANES), jnp.float32)
    pack = pack.at[0, :HIDDEN].set(params['b_hidden'][0])
    pack = pack.at[8:8 + HIDDEN, :LABELS].set(w_tail)
    pack = pack.at[8 + HIDDEN, :LABELS].set(b_tail[0])

    # Block-diagonal mask selector with 1/length folded in (exactly matches the
    # PyTorch `sum_embeddings / lengths`, including NaN for an all-zero mask row).
    lengths = mask.sum(axis=1, keepdims=True)                        # (B, 1)
    mask_scaled = mask / lengths                                     # (B, S)
    sel = (jnp.eye(B, dtype=jnp.float32)[:, :, None]
           * mask_scaled[None, :, :]).reshape(B, B * S)              # (B, B*S)

    out = pl.pallas_call(
        onehot_mlp_kernel,
        out_shape=jax.ShapeDtypeStruct((B, OUT_LANES), jnp.float32),
        grid=(1,),
        in_specs=[
            pl.BlockSpec((B * S, NUM_FEATURES), lambda i: (0, 0)),   # x (flattened)
            pl.BlockSpec((B, B * S), lambda i: (0, 0)),              # mask selector
            pl.BlockSpec((NUM_FEATURES, HIDDEN), lambda i: (0, 0)),  # w_hidden
            pl.BlockSpec((PACK_ROWS, PACK_LANES), lambda i: (0, 0)),  # packed params
        ],
        out_specs=pl.BlockSpec((B, OUT_LANES), lambda i: (0, 0)),
        compiler_params=pltpu.CompilerParams(
            dimension_semantics=("arbitrary",)),
    )(x_flat, sel, w_hidden_bf16, pack)

    # Lane-dense output, labels live in the first LABELS lanes.
    return out[:, :LABELS]


def reference(x, mask, p):
    """Pure-f32, unfused emulation of the PyTorch forward (eval mode)."""
    h = x @ p['w_hidden'] + p['b_hidden']            # hidden
    h = jnp.maximum(h, 0.0)                          # Dropout (identity) + ReLU
    y = h @ p['w_pred'] + p['b_pred']                # predict Linear
    y = y @ p['w_cls'] + p['b_cls']                  # cls
    y = y * mask[:, :, None]
    summed = y.sum(axis=1)
    lengths = mask.sum(axis=1, keepdims=True)
    return summed / lengths


if __name__ == "__main__":
    key = jax.random.PRNGKey(0)
    k = jax.random.split(key, 8)

    def w(kk, shape, fan_in):
        return jax.random.normal(kk, shape, jnp.float32) / math.sqrt(fan_in)

    # Weights stored (in_features, out_features) so the kernel does x @ W + b.
    params = {
        'w_hidden': w(k[0], (NUM_FEATURES, HIDDEN), NUM_FEATURES),
        'b_hidden': w(k[1], (1, HIDDEN), NUM_FEATURES),
        'w_pred':   w(k[2], (HIDDEN, HALF), HIDDEN),
        'b_pred':   w(k[3], (1, HALF), HIDDEN),
        'w_cls':    w(k[4], (HALF, LABELS), HALF),
        'b_cls':    w(k[5], (1, LABELS), HALF),
    }

    # Deterministic inputs: one-hot token features + a variable-length mask.
    tokens = jax.random.randint(k[6], (B, S), 0, NUM_FEATURES, dtype=jnp.int32)
    x = jax.nn.one_hot(tokens, NUM_FEATURES, dtype=jnp.float32)      # (B, S, F)
    lengths = jnp.array([S, S - 3], dtype=jnp.int32)
    mask = (jnp.arange(S)[None, :] < lengths[:, None]).astype(jnp.float32)

    out = onehot_mlp_pallas(x, mask, params)
    out = jax.block_until_ready(out)

    ref = reference(x, mask, params)
    assert out.shape == (B, LABELS)
    # Tolerance covers bf16 operands in the F=256 matmul (f32 accumulation);
    # all other kernel math is exact f32 and algebraically identical.
    assert jnp.allclose(out, ref, atol=5e-3, rtol=1e-2), (out, ref)
    print("KERNEL_OK")
</pallas_src>

<mosaic_0001>
module attributes {stable_mosaic.version = 11 : i64} {
  func.func @onehot_mlp_kernel(%arg0: i32, %arg1: memref<16x256xbf16, #tpu.memory_space<vmem>>, %arg2: memref<2x16xf32, #tpu.memory_space<vmem>>, %arg3: memref<256x32xbf16, #tpu.memory_space<vmem>>, %arg4: memref<48x128xf32, #tpu.memory_space<vmem>>, %arg5: memref<2x128xf32, #tpu.memory_space<vmem>>) attributes {dimension_semantics = [#tpu.dimension_semantics<arbitrary>], iteration_bounds = array<i64: 1>, scalar_prefetch = 0 : i64, scratch_operands = 0 : i64, tpu.core_type = #tpu.core_type<tc>, window_params = [{pipeline_mode = #tpu.pipeline_mode<synchronous>, transform_indices = @transform_0, window_bounds = array<i64: 16, 256>}, {pipeline_mode = #tpu.pipeline_mode<synchronous>, transform_indices = @transform_1, window_bounds = array<i64: 2, 16>}, {pipeline_mode = #tpu.pipeline_mode<synchronous>, transform_indices = @transform_2, window_bounds = array<i64: 256, 32>}, {pipeline_mode = #tpu.pipeline_mode<synchronous>, transform_indices = @transform_3, window_bounds = array<i64: 48, 128>}, {pipeline_mode = #tpu.pipeline_mode<synchronous>, transform_indices = @transform_4, window_bounds = array<i64: 2, 128>}]} {
    %c0 = arith.constant 0 : index
    %c0_0 = arith.constant 0 : index
    %0 = vector.load %arg4[%c0, %c0_0] : memref<48x128xf32, #tpu.memory_space<vmem>>, vector<1x32xf32>
    %c8 = arith.constant 8 : index
    %c0_1 = arith.constant 0 : index
    %1 = vector.load %arg4[%c8, %c0_1] : memref<48x128xf32, #tpu.memory_space<vmem>>, vector<32x128xf32>
    %c40 = arith.constant 40 : index
    %c0_2 = arith.constant 0 : index
    %2 = vector.load %arg4[%c40, %c0_2] : memref<48x128xf32, #tpu.memory_space<vmem>>, vector<1x128xf32>
    %c0_3 = arith.constant 0 : index
    %c0_4 = arith.constant 0 : index
    %3 = vector.load %arg1[%c0_3, %c0_4] : memref<16x256xbf16, #tpu.memory_space<vmem>>, vector<16x256xbf16>
    %c0_5 = arith.constant 0 : index
    %c0_6 = arith.constant 0 : index
    %4 = vector.load %arg3[%c0_5, %c0_6] : memref<256x32xbf16, #tpu.memory_space<vmem>>, vector<256x32xbf16>
    %cst = arith.constant dense<0.000000e+00> : vector<16x32xf32>
    %5 = tpu.matmul %3, %4, %cst {dimension_numbers = #tpu.dot_dimension_numbers<[1], [0], [0], [1], [0, 0, 1, 1], [], []>} : vector<16x256xbf16>, vector<256x32xbf16>, vector<16x32xf32> -> vector<16x32xf32>
    %6 = vector.broadcast %0 : vector<1x32xf32> to vector<16x32xf32>
    %7 = arith.addf %5, %6 : vector<16x32xf32>
    %cst_7 = arith.constant 0.000000e+00 : f32
    %8 = vector.broadcast %cst_7 : f32 to vector<16x32xf32>
    %9 = arith.maximumf %7, %8 : vector<16x32xf32>
    %c0_8 = arith.constant 0 : index
    %c0_9 = arith.constant 0 : index
    %10 = vector.load %arg2[%c0_8, %c0_9] : memref<2x16xf32, #tpu.memory_space<vmem>>, vector<2x16xf32>
    %cst_10 = arith.constant dense<0.000000e+00> : vector<2x32xf32>
    %11 = tpu.matmul %10, %9, %cst_10 {dimension_numbers = #tpu.dot_dimension_numbers<[1], [0], [0], [1], [0, 0, 1, 1], [], []>} : vector<2x16xf32>, vector<16x32xf32>, vector<2x32xf32> -> vector<2x32xf32>
    %cst_11 = arith.constant dense<0.000000e+00> : vector<2x128xf32>
    %12 = tpu.matmul %11, %1, %cst_11 {dimension_numbers = #tpu.dot_dimension_numbers<[1], [0], [0], [1], [0, 0, 1, 1], [], []>} : vector<2x32xf32>, vector<32x128xf32>, vector<2x128xf32> -> vector<2x128xf32>
    %13 = vector.broadcast %2 : vector<1x128xf32> to vector<2x128xf32>
    %14 = arith.addf %12, %13 : vector<2x128xf32>
    %c0_12 = arith.constant 0 : index
    %c0_13 = arith.constant 0 : index
    %15 = vector.load %arg5[%c0_12, %c0_13] : memref<2x128xf32, #tpu.memory_space<vmem>>, vector<2x128xf32>
    tpu.vector_store %arg5[%c0_12, %c0_13], %14 {strides = array<i32>} : memref<2x128xf32, #tpu.memory_space<vmem>>, vector<2x128xf32>,
    return
  }
  func.func @transform_0(%arg0: i32) -> (i32, i32) {
    %c0_i32 = arith.constant 0 : i32
    %c0_i32_0 = arith.constant 0 : i32
    %c0_i32_1 = arith.constant 0 : i32
    return %c0_i32, %c0_i32_0 : i32, i32
  }
  func.func @transform_1(%arg0: i32) -> (i32, i32) {
    %c0_i32 = arith.constant 0 : i32
    %c0_i32_0 = arith.constant 0 : i32
    %c0_i32_1 = arith.constant 0 : i32
    return %c0_i32, %c0_i32_0 : i32, i32
  }
  func.func @transform_2(%arg0: i32) -> (i32, i32) {
    %c0_i32 = arith.constant 0 : i32
    %c0_i32_0 = arith.constant 0 : i32
    %c0_i32_1 = arith.constant 0 : i32
    return %c0_i32, %c0_i32_0 : i32, i32
  }
  func.func @transform_3(%arg0: i32) -> (i32, i32) {
    %c0_i32 = arith.constant 0 : i32
    %c0_i32_0 = arith.constant 0 : i32
    %c0_i32_1 = arith.constant 0 : i32
    return %c0_i32, %c0_i32_0 : i32, i32
  }
  func.func @transform_4(%arg0: i32) -> (i32, i32) {
    %c0_i32 = arith.constant 0 : i32
    %c0_i32_0 = arith.constant 0 : i32
    %c0_i32_1 = arith.constant 0 : i32
    return %c0_i32, %c0_i32_0 : i32, i32
  }
}

</mosaic_0001>

<llo_original>
// kernel: tpu_custom_call.1
$region0: #{tpu_custom_call.1}
  #allocation0 [shape = 'u32[]', space=smem, size = 0x4, offset = 0x4, fixed_abs, tag = 'smem constant byte address 0x4 - core index']
  #allocation1 [shape = 'u32[144,128]{1,0:T(1,128)}', space=vmem, size = 0x12000, scoped, tag = 'internal scratch']
  %s0 = inlined_call_operand.vmem [shape: bf16[16,256], index: 0, kind: input, shape index: {}]
  %s1 = inlined_call_operand.vmem [shape: f32[2,16], index: 1, kind: input, shape index: {}]
  %s2 = inlined_call_operand.vmem [shape: bf16[256,32], index: 2, kind: input, shape index: {}]
  %s3 = inlined_call_operand.vmem [shape: f32[48,128], index: 3, kind: input, shape index: {}]
  %s4 = inlined_call_operand.hbm [shape: f32[2,128], index: 4, kind: output, shape index: {}]
  %s5 = sld [smem:[#allocation0]]
  $region26: #{tpu_custom_call.1} parent=0
    _
  %s7 = ssub.s32 1, %s5
  %s8 = scalar_select 0, %s7, %s5
  $region1: #{tpu_custom_call.1} parent=0
    #allocation2 [shape = 'u8[1024]{0}', space=vmem, size = 0x400, scoped, tag = 'output window, operand 0, single buffered']
    #allocation3 [shape = 's32[1]{0}', space=sflag, size = 0x4, scoped, tag = 'scoped memory for tpu_custom_call.1']
    %9 = vsyncpa [#allocation3], 0
    // Predicated region
    $region2: #{tpu_custom_call.1} parent=1 // pred_check
      _
    $region3: #{tpu_custom_call.1} parent=1 // pred_check_branch
      %11 = sbr.rel (0) target = $region5
    $region4: #{tpu_custom_call.1} parent=1 // pred_region
      _
    $region5: #{tpu_custom_call.1} parent=1 // pred_fallthru
      _
    // Predicated region
    $region6: #{tpu_custom_call.1} parent=1 // pred_check
      _
    $region7: #{tpu_custom_call.1} parent=1 // pred_check_branch
      %13 = sbr.rel (0) target = $region9
    $region8: #{tpu_custom_call.1} parent=1 // pred_region
      _
    $region9: #{tpu_custom_call.1} parent=1 // pred_fallthru
      _
    // Predicated region
    $region10: #{tpu_custom_call.1} parent=1 // pred_check
      _
    $region11: #{tpu_custom_call.1} parent=1 // pred_check_branch
      %15 = sbr.rel (0) target = $region13
    $region12: #{tpu_custom_call.1} parent=1 // pred_region
      _
    $region13: #{tpu_custom_call.1} parent=1 // pred_fallthru
      _
    // Predicated region
    $region14: #{tpu_custom_call.1} parent=1 // pred_check
      _
    $region15: #{tpu_custom_call.1} parent=1 // pred_check_branch
      %17 = sbr.rel (0) target = $region17
    $region16: #{tpu_custom_call.1} parent=1 // pred_region
      _
    $region17: #{tpu_custom_call.1} parent=1 // pred_fallthru
      _
    %v19 = vld [vmem:[%s3] sm:$0x1]
    %v20 = vld [vmem:[%s3 + $0x8] sm:$0xff]
    %v21 = vld [vmem:[%s3 + $0x10] sm:$0xff]
    %v22 = vld [vmem:[%s3 + $0x18] sm:$0xff]
    %v23 = vld [vmem:[%s3 + $0x20] sm:$0xff]
    %v24 = vld [vmem:[%s3 + $0x28] sm:$0x1]
    %v25 = vld [vmem:[%s0] sm:$0xff]
    %v26 = vld [vmem:[%s0 + $0x8] sm:$0xff]
    %v27 = vld [vmem:[%s2] sm:$0xf]
    %v28 = vld [vmem:[%s2 + $0x4] sm:$0xf]
    %v29 = vld [vmem:[%s2 + $0x8] sm:$0xf]
    %v30 = vld [vmem:[%s2 + $0xc] sm:$0xf]
    %v31 = vld [vmem:[%s2 + $0x10] sm:$0xf]
    %v32 = vld [vmem:[%s2 + $0x14] sm:$0xf]
    %v33 = vld [vmem:[%s2 + $0x18] sm:$0xf]
    %v34 = vld [vmem:[%s2 + $0x1c] sm:$0xf]
    %v35 = vld [vmem:[%s2 + $0x20] sm:$0xf]
    %v36 = vld [vmem:[%s2 + $0x24] sm:$0xf]
    %v37 = vld [vmem:[%s2 + $0x28] sm:$0xf]
    %v38 = vld [vmem:[%s2 + $0x2c] sm:$0xf]
    %v39 = vld [vmem:[%s2 + $0x30] sm:$0xf]
    %v40 = vld [vmem:[%s2 + $0x34] sm:$0xf]
    %v41 = vld [vmem:[%s2 + $0x38] sm:$0xf]
    %v42 = vld [vmem:[%s2 + $0x3c] sm:$0xf]
    %v43 = vld [vmem:[%s2 + $0x40] sm:$0xf]
    %v44 = vld [vmem:[%s2 + $0x44] sm:$0xf]
    %v45 = vld [vmem:[%s2 + $0x48] sm:$0xf]
    %v46 = vld [vmem:[%s2 + $0x4c] sm:$0xf]
    %v47 = vld [vmem:[%s2 + $0x50] sm:$0xf]
    %v48 = vld [vmem:[%s2 + $0x54] sm:$0xf]
    %v49 = vld [vmem:[%s2 + $0x58] sm:$0xf]
    %v50 = vld [vmem:[%s2 + $0x5c] sm:$0xf]
    %v51 = vld [vmem:[%s2 + $0x60] sm:$0xf]
    %v52 = vld [vmem:[%s2 + $0x64] sm:$0xf]
    %v53 = vld [vmem:[%s2 + $0x68] sm:$0xf]
    %v54 = vld [vmem:[%s2 + $0x6c] sm:$0xf]
    %v55 = vld [vmem:[%s2 + $0x70] sm:$0xf]
    %v56 = vld [vmem:[%s2 + $0x74] sm:$0xf]
    %v57 = vld [vmem:[%s2 + $0x78] sm:$0xf]
    %v58 = vld [vmem:[%s2 + $0x7c] sm:$0xf]
    %v59 = vlaneseq
    %v60 = vshrl.u32 %v59, 7
    %v61 = vsub.s32 0, %v60
    %v62 = vrot.slane %v19, %v61
    %v65 = vunpack.c.l.b16 %v25
    %v66 = vunpack.c.h.b16 %v25
    %v67 = vunpack.c.l.b16 %v26
    %v68 = vunpack.c.h.b16 %v26
    %v69 = vpack.c.b16 %v67, %v65
    %v70 = vpack.c.b16 %v68, %v66
    %v105 = vunpack.c.l.b16 %v27
    %v106 = vunpack.c.l.b16 %v28
    %v107 = vunpack.c.l.b16 %v29
    %v108 = vunpack.c.l.b16 %v30
    %v109 = vunpack.c.l.b16 %v31
    %v110 = vunpack.c.l.b16 %v32
    %v111 = vunpack.c.l.b16 %v33
    %v112 = vunpack.c.l.b16 %v34
    %v113 = vunpack.c.l.b16 %v35
    %v114 = vunpack.c.l.b16 %v36
    %v115 = vunpack.c.l.b16 %v37
    %v116 = vunpack.c.l.b16 %v38
    %v117 = vunpack.c.l.b16 %v39
    %v118 = vunpack.c.l.b16 %v40
    %v119 = vunpack.c.l.b16 %v41
    %v120 = vunpack.c.l.b16 %v42
    %v121 = vunpack.c.l.b16 %v43
    %v122 = vunpack.c.l.b16 %v44
    %v123 = vunpack.c.l.b16 %v45
    %v124 = vunpack.c.l.b16 %v46
    %v125 = vunpack.c.l.b16 %v47
    %v126 = vunpack.c.l.b16 %v48
    %v127 = vunpack.c.l.b16 %v49
    %v128 = vunpack.c.l.b16 %v50
    %v129 = vunpack.c.l.b16 %v51
    %v130 = vunpack.c.l.b16 %v52
    %v131 = vunpack.c.l.b16 %v53
    %v132 = vunpack.c.l.b16 %v54
    %v133 = vunpack.c.l.b16 %v55
    %v134 = vunpack.c.l.b16 %v56
    %v135 = vunpack.c.l.b16 %v57
    %v136 = vunpack.c.l.b16 %v58
    %v137 = vpack.c.b16 %v106, %v105
    %v138 = vpack.c.b16 %v108, %v107
    %v139 = vpack.c.b16 %v110, %v109
    %v140 = vpack.c.b16 %v112, %v111
    %v141 = vpack.c.b16 %v114, %v113
    %v142 = vpack.c.b16 %v116, %v115
    %v143 = vpack.c.b16 %v118, %v117
    %v144 = vpack.c.b16 %v120, %v119
    %v145 = vpack.c.b16 %v122, %v121
    %v146 = vpack.c.b16 %v124, %v123
    %v147 = vpack.c.b16 %v126, %v125
    %v148 = vpack.c.b16 %v128, %v127
    %v149 = vpack.c.b16 %v130, %v129
    %v150 = vpack.c.b16 %v132, %v131
    %v151 = vpack.c.b16 %v134, %v133
    %v152 = vpack.c.b16 %v136, %v135
    %169 = vmatprep.subr.bf16.mxu0 0
    %170 = vmatpush1.bf16.msra.mxu0 %v144
    %171 = vmatprep.subr.bf16.mxu0 0
    %172 = vmatpush1.bf16.msra.mxu0 %v143
    %173 = vmatprep.subr.bf16.mxu0 0
    %174 = vmatpush1.bf16.msra.mxu0 %v142
    %175 = vmatprep.subr.bf16.mxu0 0
    %176 = vmatpush1.bf16.msra.mxu0 %v141
    %177 = vmatprep.subr.bf16.mxu0 0
    %178 = vmatpush1.bf16.msra.mxu0 %v140
    %179 = vmatprep.subr.bf16.mxu0 0
    %180 = vmatpush1.bf16.msra.mxu0 %v139
    %181 = vmatprep.subr.bf16.mxu0 0
    %182 = vmatpush1.bf16.msra.mxu0 %v138
    %183 = vmatprep.subr.bf16.mxu0 0
    %184 = vmatpush1.bf16.msra.mxu0 %v137
    %185 = vmatprep.subr.bf16.mxu0 0
    %186 = vmatpush2.bf16.msra.mxu0 %v152
    %187 = vmatprep.subr.bf16.mxu0 0
    %188 = vmatpush2.bf16.msra.mxu0 %v151
    %189 = vmatprep.subr.bf16.mxu0 0
    %190 = vmatpush2.bf16.msra.mxu0 %v150
    %191 = vmatprep.subr.bf16.mxu0 0
    %192 = vmatpush2.bf16.msra.mxu0 %v149
    %193 = vmatprep.subr.bf16.mxu0 0
    %194 = vmatpush2.bf16.msra.mxu0 %v148
    %195 = vmatprep.subr.bf16.mxu0 0
    %196 = vmatpush2.bf16.msra.mxu0 %v147
    %197 = vmatprep.subr.bf16.mxu0 0
    %198 = vmatpush2.bf16.msra.mxu0 %v146
    %199 = vmatprep.subr.bf16.mxu0 0
    %200 = vmatpush2.bf16.msra.mxu0 %v145
    %201 = vmatprep.mubr.bf16.mxu0 %v70
    %202 = vmatmul.mubr.bf16.gmra.mxu0 %v69
    %v203 = vpop.f32.mrf.mxu0
    %v204 = vadd.f32 %v62, %v203
    %v205 = vpop.f32.mrf.mxu0
    %v206 = vpop.f32.mrf.mxu0
    %v207 = vadd.f32 %v62, %v206
    %v208 = vpop.f32.mrf.mxu0
    %209 = vdwg.mxu0
    %v210 = vmax.f32 %v204, 0.0
    %v211 = vmax.f32 %v207, 0.0
    %v212 = vld [vmem:[%s1] sm:$0x3]
    %vm213 = vcmask 130048
    %v215 = vsel %vm213, %v212, 0
    %217 = vmatprep.subr.mxu0 0.0
    %218 = vmatpush1.msra.mxu0 0.0
    %219 = vmatprep.subr.mxu0 0.0
    %220 = vmatpush1.msra.mxu0 0.0
    %221 = vmatprep.subr.mxu0 0.0
    %222 = vmatpush1.msra.mxu0 0.0
    %223 = vmatprep.subr.mxu0 0.0
    %224 = vmatpush1.msra.mxu0 0.0
    %225 = vmatprep.subr.mxu0 0.0
    %226 = vmatpush1.msra.mxu0 0.0
    %227 = vmatprep.subr.mxu0 0.0
    %228 = vmatpush1.msra.mxu0 0.0
    %229 = vmatprep.subr.mxu0 0.0
    %230 = vmatpush1.msra.mxu0 0.0
    %231 = vmatprep.subr.mxu0 0.0
    %232 = vmatpush1.msra.mxu0 0.0
    %233 = vmatprep.subr.mxu0 0.0
    %234 = vmatpush1.msra.mxu0 0.0
    %235 = vmatprep.subr.mxu0 0.0
    %236 = vmatpush1.msra.mxu0 0.0
    %237 = vmatprep.subr.mxu0 0.0
    %238 = vmatpush1.msra.mxu0 0.0
    %239 = vmatprep.subr.mxu0 0.0
    %240 = vmatpush1.msra.mxu0 0.0
    %241 = vmatprep.subr.mxu0 0.0
    %242 = vmatpush1.msra.mxu0 0.0
    %243 = vmatprep.subr.mxu0 0.0
    %244 = vmatpush1.msra.mxu0 0.0
    %245 = vmatprep.subr.mxu0 0.0
    %246 = vmatpush1.msra.mxu0 %v211
    %247 = vmatprep.subr.mxu0 0.0
    %248 = vmatpush1.msra.mxu0 %v210
    %249 = vmatprep.subr.mxu0 0.0
    %250 = vmatpush2.msra.mxu0 0.0
    %251 = vmatprep.subr.mxu0 0.0
    %252 = vmatpush2.msra.mxu0 0.0
    %253 = vmatprep.subr.mxu0 0.0
    %254 = vmatpush2.msra.mxu0 0.0
    %255 = vmatprep.subr.mxu0 0.0
    %256 = vmatpush2.msra.mxu0 0.0
    %257 = vmatprep.subr.mxu0 0.0
    %258 = vmatpush2.msra.mxu0 0.0
    %259 = vmatprep.subr.mxu0 0.0
    %260 = vmatpush2.msra.mxu0 0.0
    %261 = vmatprep.subr.mxu0 0.0
    %262 = vmatpush2.msra.mxu0 0.0
    %263 = vmatprep.subr.mxu0 0.0
    %264 = vmatpush2.msra.mxu0 0.0
    %265 = vmatprep.subr.mxu0 0.0
    %266 = vmatpush2.msra.mxu0 0.0
    %267 = vmatprep.subr.mxu0 0.0
    %268 = vmatpush2.msra.mxu0 0.0
    %269 = vmatprep.subr.mxu0 0.0
    %270 = vmatpush2.msra.mxu0 0.0
    %271 = vmatprep.subr.mxu0 0.0
    %272 = vmatpush2.msra.mxu0 0.0
    %273 = vmatprep.subr.mxu0 0.0
    %274 = vmatpush2.msra.mxu0 0.0
    %275 = vmatprep.subr.mxu0 0.0
    %276 = vmatpush2.msra.mxu0 0.0
    %277 = vmatprep.subr.mxu0 0.0
    %278 = vmatpush2.msra.mxu0 0.0
    %279 = vmatprep.subr.mxu0 0.0
    %280 = vmatpush2.msra.mxu0 0.0
    %281 = vmatprep.mubr.f32.mxu0 0.0
    %282 = vmatmul.mubr.f32.gmra.mxu0 %v215
    %v283 = vpop.f32.mrf.mxu0
    %v284 = vadd.f32 0.0, %v283
    %v285 = vpop.f32.mrf.mxu0
    %286 = vdwg.mxu0
    %v287 = vlaneseq
    %v288 = vshrl.u32 %v287, 7
    %v289 = vsub.s32 0, %v288
    %v290 = vrot.slane %v24, %v289
    %vm291 = vcmask 261120
    %v293 = vsel %vm291, %v284, 0
    %295 = vmatprep.subr.mxu0 0.0
    %296 = vmatpush1.msra.mxu0 0.0
    %297 = vmatprep.subr.mxu0 0.0
    %298 = vmatpush1.msra.mxu0 0.0
    %299 = vmatprep.subr.mxu0 0.0
    %300 = vmatpush1.msra.mxu0 0.0
    %301 = vmatprep.subr.mxu0 0.0
    %302 = vmatpush1.msra.mxu0 0.0
    %303 = vmatprep.subr.mxu0 0.0
    %304 = vmatpush1.msra.mxu0 0.0
    %305 = vmatprep.subr.mxu0 0.0
    %306 = vmatpush1.msra.mxu0 0.0
    %307 = vmatprep.subr.mxu0 0.0
    %308 = vmatpush1.msra.mxu0 0.0
    %309 = vmatprep.subr.mxu0 0.0
    %310 = vmatpush1.msra.mxu0 0.0
    %311 = vmatprep.subr.mxu0 0.0
    %312 = vmatpush1.msra.mxu0 0.0
    %313 = vmatprep.subr.mxu0 0.0
    %314 = vmatpush1.msra.mxu0 0.0
    %315 = vmatprep.subr.mxu0 0.0
    %316 = vmatpush1.msra.mxu0 0.0
    %317 = vmatprep.subr.mxu0 0.0
    %318 = vmatpush1.msra.mxu0 0.0
    %319 = vmatprep.subr.mxu0 0.0
    %320 = vmatpush1.msra.mxu0 %v23
    %321 = vmatprep.subr.mxu0 0.0
    %322 = vmatpush1.msra.mxu0 %v22
    %323 = vmatprep.subr.mxu0 0.0
    %324 = vmatpush1.msra.mxu0 %v21
    %325 = vmatprep.subr.mxu0 0.0
    %326 = vmatpush1.msra.mxu0 %v20
    %327 = vmatprep.subr.mxu0 0.0
    %328 = vmatpush2.msra.mxu0 0.0
    %329 = vmatprep.subr.mxu0 0.0
    %330 = vmatpush2.msra.mxu0 0.0
    %331 = vmatprep.subr.mxu0 0.0
    %332 = vmatpush2.msra.mxu0 0.0
    %333 = vmatprep.subr.mxu0 0.0
    %334 = vmatpush2.msra.mxu0 0.0
    %335 = vmatprep.subr.mxu0 0.0
    %336 = vmatpush2.msra.mxu0 0.0
    %337 = vmatprep.subr.mxu0 0.0
    %338 = vmatpush2.msra.mxu0 0.0
    %339 = vmatprep.subr.mxu0 0.0
    %340 = vmatpush2.msra.mxu0 0.0
    %341 = vmatprep.subr.mxu0 0.0
    %342 = vmatpush2.msra.mxu0 0.0
    %343 = vmatprep.subr.mxu0 0.0
    %344 = vmatpush2.msra.mxu0 0.0
    %345 = vmatprep.subr.mxu0 0.0
    %346 = vmatpush2.msra.mxu0 0.0
    %347 = vmatprep.subr.mxu0 0.0
    %348 = vmatpush2.msra.mxu0 0.0
    %349 = vmatprep.subr.mxu0 0.0
    %350 = vmatpush2.msra.mxu0 0.0
    %351 = vmatprep.subr.mxu0 0.0
    %352 = vmatpush2.msra.mxu0 0.0
    %353 = vmatprep.subr.mxu0 0.0
    %354 = vmatpush2.msra.mxu0 0.0
    %355 = vmatprep.subr.mxu0 0.0
    %356 = vmatpush2.msra.mxu0 0.0
    %357 = vmatprep.subr.mxu0 0.0
    %358 = vmatpush2.msra.mxu0 0.0
    %359 = vmatprep.mubr.f32.mxu0 0.0
    %360 = vmatmul.mubr.f32.gmra.mxu0 %v293
    %v361 = vpop.f32.mrf.mxu0
    %v362 = vadd.f32 %v290, %v361
    %v363 = vpop.f32.mrf.mxu0
    %364 = vdwg.mxu0
    %365 = vst [vmem:[#allocation2] sm:$0x3] %v362
    // Predicated region
    $region18: #{tpu_custom_call.1} parent=1 // pred_check
      _
    $region19: #{tpu_custom_call.1} parent=1 // pred_check_branch
      %367 = sbr.rel (0) target = $region21
    $region20: #{tpu_custom_call.1} parent=1 // pred_region
      %s369 = ssub.s32 32, 32
      %370 = vsyncadd [#allocation3], %s369
      %s372 = sshll.u32 [#allocation2], 4
      %s373 = int_to_ptr.vmem [resolvable:$true] %s372
      %375 = dma.vmem_to_hbm [thread:$0]  %s373, 32, %s4, [#allocation3]
    $region21: #{tpu_custom_call.1} parent=1 // pred_fallthru
      _
    // Predicated region
    $region22: #{tpu_custom_call.1} parent=1 // pred_check
      _
    $region23: #{tpu_custom_call.1} parent=1 // pred_check_branch
      %377 = sbr.rel (0) target = $region25
    $region24: #{tpu_custom_call.1} parent=1 // pred_region
      %378 = dma.done [#allocation3], 32
    $region25: #{tpu_custom_call.1} parent=1 // pred_fallthru
      _
    %379 = vsyncpa [#allocation3], 1

</llo_original>
